<compile_context>
chip_gen: v7x
topology: tpu7x:2x2x1
jax: 0.10.0
libtpu: 0.0.40
codegen_flags: <defaults>
</compile_context>

<pallas_src>
import math
import functools

import jax
import jax.numpy as jnp
from jax.experimental import pallas as pl
from jax.experimental.pallas import tpu as pltpu


# ---------------------------------------------------------------------------
# Kernel 1: row-wise L2 normalization of the class weight, transposed bf16 out.
# ---------------------------------------------------------------------------
def l2norm_rows_t_kernel(x_ref, o_ref):
    x = x_ref[...].astype(jnp.float32)                     # (tr, D)
    ss = jnp.sum(x * x, axis=1, keepdims=True)
    inv = jax.lax.rsqrt(jnp.maximum(ss, 1e-24))            # == 1 / max(||x||, 1e-12)
    o_ref[...] = jnp.transpose(x * inv).astype(o_ref.dtype)  # (D, tr) bf16


def l2_normalize_rows_transposed(w, out_dtype=jnp.bfloat16, row_tile=1024):
    """(C, D) f32 weight -> (D, C) bf16, rows L2-normalized."""
    C, D = w.shape
    tr = min(row_tile, C)
    # TODO(synk): pad C to the tile multiple for arbitrary class counts.
    assert C % tr == 0, "class count must be a multiple of the row tile"
    assert tr == C or tr % 128 == 0, "tiled transpose needs 128-aligned row tile"
    return pl.pallas_call(
        l2norm_rows_t_kernel,
        out_shape=jax.ShapeDtypeStruct((D, C), out_dtype),
        grid=(C // tr,),
        in_specs=[pl.BlockSpec((tr, D), lambda i: (i, 0))],
        out_specs=pl.BlockSpec((D, tr), lambda i: (0, i)),
        compiler_params=pltpu.CompilerParams(
            dimension_semantics=("parallel",),
            vmem_limit_bytes=32 * 1024 * 1024),
    )(w)


# ---------------------------------------------------------------------------
# Kernel 2: tiled cos-theta matmul + arcface epilogue + online-LSE CE loss.
# ---------------------------------------------------------------------------
def arcface_tile_kernel(fn_ref, wnt_ref, tgt_ref, side_ref, t_ref,
                        logits_ref, rowloss_ref, m_scr, l_scr, *, scale):
    j = pl.program_id(1)

    @pl.when(j == 0)
    def _():
        m_scr[...] = jnp.full_like(m_scr, -jnp.inf)
        l_scr[...] = jnp.zeros_like(l_scr)

    # Canonical (tm, D) x (D, tn) matmul: bf16 operands, f32 MXU accumulation,
    # no weight-tile transpose in the hot loop.
    cos = jnp.dot(fn_ref[...], wnt_ref[...], preferred_element_type=jnp.float32)
    cos = jnp.clip(cos, -1.0, 1.0)
    tm, tn = cos.shape

    ctm = side_ref[0]             # (tm, 1) f32  per-row cos(theta + m)
    ftl = side_ref[1]             # (tm, 1) f32  per-row final target logit
    t_new = t_ref[0, 0]           # updated momentum buffer (scalar, SMEM)

    # Offset the (tm, 1) targets instead of the (tm, tn) iota (cheaper on VPU).
    tgt_local = tgt_ref[...] - j * tn
    col = jax.lax.broadcasted_iota(jnp.int32, (tm, tn), 1)
    onehot = col == tgt_local

    # Fused epilogue: hard-example reweighting, target scatter, scale.
    hard = cos * (t_new + cos)
    logits = jnp.where(onehot, ftl, jnp.where(cos > ctm, hard, cos)) * scale
    # bf16 store halves the dominant (B, C) HBM stream; LSE uses the f32 values.
    logits_ref[...] = logits.astype(logits_ref.dtype)

    # Online log-sum-exp across the C (reduction) axis.
    # TODO(synk): on v6e/v7x the exp could run in bf16 on the EUP (v5e: f32 only).
    m_prev = m_scr[...]
    m_new = jnp.maximum(m_prev, jnp.max(logits, axis=1, keepdims=True))
    l_scr[...] = (l_scr[...] * jnp.exp(m_prev - m_new)
                  + jnp.sum(jnp.exp(logits - m_new), axis=1, keepdims=True))
    m_scr[...] = m_new

    @pl.when(j == pl.num_programs(1) - 1)
    def _():
        lse = m_scr[...] + jnp.log(l_scr[...])
        rowloss_ref[...] = lse - ftl * scale      # CE per row: lse - logit[target]


# ---------------------------------------------------------------------------
# Wrapper: prologue (normalize / target logit / margin / t update) + main call.
# ---------------------------------------------------------------------------
def _arcface_prologue(features, weight, targets, t, margin):
    cos_m = math.cos(margin)
    sin_m = math.sin(margin)
    threshold = math.cos(math.pi - margin)
    mm = math.sin(math.pi - margin) * margin
    eps = 1e-12

    # f32 feature normalization (cheap, O(B*D)); bf16 copy feeds the MXU.
    f32 = features.astype(jnp.float32)
    fn32 = f32 / jnp.maximum(jnp.linalg.norm(f32, axis=1, keepdims=True), eps)
    fn_bf16 = fn32.astype(jnp.bfloat16)

    # One-shot Pallas pass over the big (C, D) weight -> (D, C) bf16.
    wnt_bf16 = l2_normalize_rows_transposed(weight)

    # Exact f32 path (gathered rows only) for the per-row margin terms and the
    # running-buffer update, so `t` does not drift vs the PyTorch f32 math.
    w_rows = weight[targets].astype(jnp.float32)                     # (B, D)
    wn_rows = w_rows / jnp.maximum(
        jnp.linalg.norm(w_rows, axis=1, keepdims=True), eps)
    target_logit = jnp.clip(
        jnp.sum(fn32 * wn_rows, axis=1, keepdims=True), -1.0, 1.0)
    sin_theta = jnp.sqrt(1.0 - target_logit * target_logit)
    cos_theta_m = target_logit * cos_m - sin_theta * sin_m
    final_tl = jnp.where(target_logit > threshold,
                         cos_theta_m, target_logit - mm)
    t_new = (jnp.mean(target_logit) * 0.01
             + 0.99 * jnp.asarray(t, jnp.float32).reshape(()))
    return fn_bf16, wnt_bf16, cos_theta_m, final_tl, t_new


def arcface_forward(features, weight, targets, t, *,
                    scale=64.0, margin=0.35, weight_loss=1.0,
                    tm=256, tn=2048):
    """Returns (loss, pred_class_logits[bf16], t_new) -- training-mode forward."""
    B, D = features.shape
    C, D2 = weight.shape
    assert D == D2
    tm = min(tm, B)
    tn = min(tn, C)
    # v7x megacore: keep >= 2 blocks on the parallel batch axis when the halved
    # tile still divides B and respects the 8-row sublane granule.
    if B // tm < 2:
        half = tm // 2
        if half >= 8 and half % 8 == 0 and B % half == 0:
            tm = half
    # TODO(synk): pad B / C to tile multiples (with -inf masking of padded class
    # columns before the LSE) to support non-divisible shapes.
    assert B % tm == 0 and C % tn == 0, "shapes must divide the tile sizes"
    # TODO(synk): add a loss-only path that skips materializing the (B, C)
    # logits entirely when the caller does not need them.

    fn_bf16, wnt_bf16, cos_theta_m, final_tl, t_new = _arcface_prologue(
        features, weight, targets, t, margin)

    # Merge the two per-row f32 side inputs into one array (single small DMA).
    side = jnp.stack([cos_theta_m, final_tl], axis=0)      # (2, B, 1) f32

    kernel = functools.partial(arcface_tile_kernel, scale=float(scale))
    logits, row_loss = pl.pallas_call(
        kernel,
        out_shape=(jax.ShapeDtypeStruct((B, C), jnp.bfloat16),
                   jax.ShapeDtypeStruct((B, 1), jnp.float32)),
        grid=(B // tm, C // tn),
        in_specs=[
            pl.BlockSpec((tm, D), lambda i, j: (i, 0)),        # feats_n (bf16)
            pl.BlockSpec((D, tn), lambda i, j: (0, j)),        # weight_n^T (bf16)
            pl.BlockSpec((tm, 1), lambda i, j: (i, 0)),        # targets (int32)
            pl.BlockSpec((2, tm, 1), lambda i, j: (0, i, 0)),  # [ctm, ftl] (f32)
            pl.BlockSpec(memory_space=pltpu.MemorySpace.SMEM),  # t_new scalar
        ],
        out_specs=(
            pl.BlockSpec((tm, tn), lambda i, j: (i, j)),       # logits (bf16, lane-dense)
            pl.BlockSpec((tm, 1), lambda i, j: (i, 0)),        # per-row CE loss
        ),
        scratch_shapes=[pltpu.VMEM((tm, 1), jnp.float32),      # running max
                        pltpu.VMEM((tm, 1), jnp.float32)],     # running sum-exp
        compiler_params=pltpu.CompilerParams(
            dimension_semantics=("parallel", "arbitrary"),
            vmem_limit_bytes=32 * 1024 * 1024),
    )(fn_bf16, wnt_bf16,
      targets.reshape(B, 1).astype(jnp.int32),
      side, t_new.reshape(1, 1))

    loss = jnp.mean(row_loss) * weight_loss
    return loss, logits, t_new


# ---------------------------------------------------------------------------
# Pure-JAX reference mirroring the PyTorch forward (training mode, f32).
# ---------------------------------------------------------------------------
def arcface_reference(features, weight, targets, t, *,
                      scale=64.0, margin=0.35, weight_loss=1.0):
    cos_m, sin_m = math.cos(margin), math.sin(margin)
    threshold = math.cos(math.pi - margin)
    mm = math.sin(math.pi - margin) * margin
    eps = 1e-12
    fn = features / jnp.maximum(
        jnp.linalg.norm(features, axis=1, keepdims=True), eps)
    wn = weight / jnp.maximum(
        jnp.linalg.norm(weight, axis=1, keepdims=True), eps)
    cos_theta = jnp.clip(fn @ wn.T, -1.0, 1.0)
    B = features.shape[0]
    target_logit = cos_theta[jnp.arange(B), targets][:, None]
    sin_theta = jnp.sqrt(1.0 - target_logit ** 2)
    cos_theta_m = target_logit * cos_m - sin_theta * sin_m
    mask = cos_theta > cos_theta_m
    final_target_logit = jnp.where(target_logit > threshold,
                                   cos_theta_m, target_logit - mm)
    t_new = jnp.mean(target_logit) * 0.01 + 0.99 * jnp.asarray(t, jnp.float32)
    cos_theta = jnp.where(mask, cos_theta * (t_new + cos_theta), cos_theta)
    onehot = jax.nn.one_hot(targets, cos_theta.shape[1], dtype=jnp.bool_)
    cos_theta = jnp.where(onehot, final_target_logit, cos_theta)
    logits = cos_theta * scale
    lse = jax.scipy.special.logsumexp(logits, axis=1)
    tl = logits[jnp.arange(B), targets]
    loss = jnp.mean(lse - tl) * weight_loss
    return loss, logits, t_new.reshape(())


if __name__ == "__main__":
    B, in_feat, num_classes = 32, 128, 512
    scale, margin, weight_loss = 64.0, 0.35, 1.0

    key = jax.random.PRNGKey(0)
    k_feat, k_w, k_tgt = jax.random.split(key, 3)
    features = jax.random.normal(k_feat, (B, in_feat), dtype=jnp.float32)
    # kaiming_uniform_(a=sqrt(1)): bound = sqrt(6 / (2 * fan_in))
    bound = math.sqrt(6.0 / (2.0 * in_feat))
    weight = jax.random.uniform(k_w, (num_classes, in_feat),
                                minval=-bound, maxval=bound, dtype=jnp.float32)
    targets = jax.random.randint(k_tgt, (B,), 0, num_classes, dtype=jnp.int32)
    t_buf = jnp.zeros((), jnp.float32)      # register_buffer('t', torch.zeros(1))

    # Small tiles so the demo actually exercises the (B, C) grid and the online
    # LSE across multiple C tiles: grid = (2, 4).  Production defaults are large.
    loss, logits, t_new = arcface_forward(
        features, weight, targets, t_buf,
        scale=scale, margin=margin, weight_loss=weight_loss, tm=16, tn=128)
    jax.block_until_ready((loss, logits, t_new))

    # Default (auto) tile path — collapses to tm=16, tn=512 at these shapes —
    # checks the tile selection logic and tiling-invariance of the online LSE.
    loss_d, logits_d, t_new_d = arcface_forward(
        features, weight, targets, t_buf,
        scale=scale, margin=margin, weight_loss=weight_loss)
    jax.block_until_ready((loss_d, logits_d, t_new_d))
    assert jnp.allclose(loss, loss_d, rtol=1e-3, atol=1e-3), "tiling-dependent loss"
    assert jnp.allclose(t_new, t_new_d), "tiling-dependent t"

    # --- check 1: "matched" reference -------------------------------------
    # Same bf16 matmul operands + same f32 per-row prologue; differences are
    # the bf16 logits output rounding, MXU-vs-XLA f32 accumulation order, and
    # (rare) hard-example-mask flips exactly at the comparison boundary.
    fn_bf16, wnt_bf16, ctm, ftl, t_pro = _arcface_prologue(
        features, weight, targets, t_buf, margin)
    cos_ref = jnp.clip(
        fn_bf16.astype(jnp.float32) @ wnt_bf16.astype(jnp.float32), -1.0, 1.0)
    onehot = jax.nn.one_hot(targets, num_classes, dtype=jnp.bool_)
    hard = cos_ref * (t_pro + cos_ref)
    match_logits = jnp.where(onehot, ftl,
                             jnp.where(cos_ref > ctm, hard, cos_ref)) * scale
    match_lse = jax.scipy.special.logsumexp(match_logits, axis=1)
    match_loss = jnp.mean(match_lse - ftl[:, 0] * scale) * weight_loss

    logits_f32 = logits.astype(jnp.float32)
    tol = 5e-2 + 5e-3 * jnp.abs(match_logits)     # bf16 store rounding + accum order
    frac_ok = jnp.mean((jnp.abs(logits_f32 - match_logits) <= tol).astype(jnp.float32))
    assert float(frac_ok) >= 0.999, f"logits mismatch vs matched ref ({frac_ok})"
    assert jnp.allclose(loss, match_loss, rtol=1e-3, atol=1e-2), "loss mismatch"
    assert jnp.allclose(t_new, t_pro, atol=1e-6), "t buffer mismatch"

    # --- check 2: loose sanity vs the exact f32 PyTorch-equivalent numerics --
    # (bf16 matmul inputs shift individual logits by up to ~scale*few*1e-3.)
    f32_loss, f32_logits, f32_t = arcface_reference(
        features, weight, targets, t_buf,
        scale=scale, margin=margin, weight_loss=weight_loss)
    tol32 = 1.0 + 2e-2 * jnp.abs(f32_logits)
    frac_ok32 = jnp.mean((jnp.abs(logits_f32 - f32_logits) <= tol32).astype(jnp.float32))
    assert float(frac_ok32) >= 0.99, f"logits mismatch vs f32 ref ({frac_ok32})"
    assert jnp.allclose(loss, f32_loss, rtol=2e-2, atol=0.3), "loss mismatch vs f32 ref"
    assert jnp.allclose(t_new, f32_t, atol=1e-4), "t mismatch vs f32 ref"

    print("KERNEL_OK")
</pallas_src>

<mosaic_0001>
module attributes {stable_mosaic.version = 11 : i64} {
  func.func @l2norm_rows_t_kernel(%arg0: i32, %arg1: memref<512x128xf32, #tpu.memory_space<vmem>>, %arg2: memref<128x512xbf16, #tpu.memory_space<vmem>>) attributes {dimension_semantics = [#tpu.dimension_semantics<parallel>], iteration_bounds = array<i64: 1>, scalar_prefetch = 0 : i64, scratch_operands = 0 : i64, tpu.core_type = #tpu.core_type<tc>, window_params = [{transform_indices = @transform_0, window_bounds = array<i64: 512, 128>}, {transform_indices = @transform_1, window_bounds = array<i64: 128, 512>}]} {
    %c0 = arith.constant 0 : index
    %c0_0 = arith.constant 0 : index
    %0 = vector.load %arg1[%c0, %c0_0] : memref<512x128xf32, #tpu.memory_space<vmem>>, vector<512x128xf32>
    %1 = arith.mulf %0, %0 : vector<512x128xf32>
    %cst = arith.constant dense<0.000000e+00> : vector<512xf32>
    %2 = vector.multi_reduction <add>, %1, %cst [1] : vector<512x128xf32> to vector<512xf32>
    %3 = vector.shape_cast %2 : vector<512xf32> to vector<512x1xf32>
    %cst_1 = arith.constant 1.000000e-24 : f32
    %4 = vector.broadcast %cst_1 : f32 to vector<512x1xf32>
    %5 = arith.maximumf %3, %4 : vector<512x1xf32>
    %6 = math.rsqrt %5 : vector<512x1xf32>
    %7 = vector.broadcast %6 : vector<512x1xf32> to vector<512x128xf32>
    %8 = arith.mulf %0, %7 : vector<512x128xf32>
    %9 = tpu.transpose %8, [1, 0] : vector<512x128xf32> -> vector<128x512xf32>
    %10 = arith.truncf %9 : vector<128x512xf32> to vector<128x512xbf16>
    %c0_2 = arith.constant 0 : index
    %c0_3 = arith.constant 0 : index
    %11 = vector.load %arg2[%c0_2, %c0_3] : memref<128x512xbf16, #tpu.memory_space<vmem>>, vector<128x512xbf16>
    tpu.vector_store %arg2[%c0_2, %c0_3], %10 {strides = array<i32>} : memref<128x512xbf16, #tpu.memory_space<vmem>>, vector<128x512xbf16>,
    return
  }
  func.func @transform_0(%arg0: i32) -> (i32, i32) {
    %c0_i32 = arith.constant 0 : i32
    %c0_i32_0 = arith.constant 0 : i32
    return %arg0, %c0_i32 : i32, i32
  }
  func.func @transform_1(%arg0: i32) -> (i32, i32) {
    %c0_i32 = arith.constant 0 : i32
    %c0_i32_0 = arith.constant 0 : i32
    return %c0_i32, %arg0 : i32, i32
  }
}

</mosaic_0001>

<llo_original>
// kernel: tpu_custom_call.1
$region0: #{tpu_custom_call.1}
  #allocation0 [shape = 'u32[]', space=smem, size = 0x4, offset = 0x4, fixed_abs, tag = 'smem constant byte address 0x4 - core index']
  #allocation1 [shape = 'u32[144,128]{1,0:T(1,128)}', space=vmem, size = 0x12000, scoped, tag = 'internal scratch']
  %s0 = inlined_call_operand.hbm [shape: f32[512,128], index: 0, kind: input, shape index: {}]
  %s1 = inlined_call_operand.hbm [shape: bf16[128,512], index: 1, kind: output, shape index: {}]
  %s2 = sld [smem:[#allocation0]]
  $region18: #{tpu_custom_call.1} parent=0
    _
  %s4 = ssub.s32 1, %s2
  %s5 = scalar_select 0, %s4, %s2
  $region1: #{tpu_custom_call.1} parent=0
    #allocation2 [shape = 'u8[262144]{0}', space=vmem, size = 0x40000, scoped, tag = 'input window, operand 0, single buffered']
    #allocation3 [shape = 's32[1]{0}', space=sflag, size = 0x4, scoped, tag = 'scoped memory for tpu_custom_call.1']
    #allocation4 [shape = 's32[1]{0}', space=sflag, size = 0x4, scoped, tag = 'scoped memory for tpu_custom_call.1']
    #allocation5 [shape = 'u8[131072]{0}', space=vmem, size = 0x20000, scoped, tag = 'output window, operand 0, single buffered']
    %6 = vsyncpa [#allocation3], 0
    %7 = vsyncpa [#allocation4], 0
    // Predicated region
    $region2: #{tpu_custom_call.1} parent=1 // pred_check
      _
    $region3: #{tpu_custom_call.1} parent=1 // pred_check_branch
      %9 = sbr.rel (0) target = $region5
    $region4: #{tpu_custom_call.1} parent=1 // pred_region
      %s11 = ssub.s32 8192, 8192
      %12 = vsyncadd [#allocation3], %s11
      %s13 = sshll.u32 [#allocation2], 4
      %s14 = int_to_ptr.vmem [resolvable:$true] %s13
      %19 = dma.hbm_to_vmem [thread:$0]  %s0, 8192, %s14, [#allocation3], 128, 128, 8
    $region5: #{tpu_custom_call.1} parent=1 // pred_fallthru
      _
    // Predicated region
    $region6: #{tpu_custom_call.1} parent=1 // pred_check
      _
    $region7: #{tpu_custom_call.1} parent=1 // pred_check_branch
      %21 = sbr.rel (0) target = $region9
    $region8: #{tpu_custom_call.1} parent=1 // pred_region
      %22 = dma.done [#allocation3], 8192
    $region9: #{tpu_custom_call.1} parent=1 // pred_fallthru
      _
    %v23 = vld [vmem:[#allocation2] sm:$0xff]
    %v24 = vld [vmem:[#allocation2 + $0x8] sm:$0xff]
    %v25 = vld [vmem:[#allocation2 + $0x10] sm:$0xff]
    %v26 = vld [vmem:[#allocation2 + $0x18] sm:$0xff]
    %v27 = vld [vmem:[#allocation2 + $0x20] sm:$0xff]
    %v28 = vld [vmem:[#allocation2 + $0x28] sm:$0xff]
    %v29 = vld [vmem:[#allocation2 + $0x30] sm:$0xff]
    %v30 = vld [vmem:[#allocation2 + $0x38] sm:$0xff]
    %v31 = vld [vmem:[#allocation2 + $0x40] sm:$0xff]
    %v32 = vld [vmem:[#allocation2 + $0x48] sm:$0xff]
    %v33 = vld [vmem:[#allocation2 + $0x50] sm:$0xff]
    %v34 = vld [vmem:[#allocation2 + $0x58] sm:$0xff]
    %v35 = vld [vmem:[#allocation2 + $0x60] sm:$0xff]
    %v36 = vld [vmem:[#allocation2 + $0x68] sm:$0xff]
    %v37 = vld [vmem:[#allocation2 + $0x70] sm:$0xff]
    %v38 = vld [vmem:[#allocation2 + $0x78] sm:$0xff]
    %v39 = vld [vmem:[#allocation2 + $0x80] sm:$0xff]
    %v40 = vld [vmem:[#allocation2 + $0x88] sm:$0xff]
    %v41 = vld [vmem:[#allocation2 + $0x90] sm:$0xff]
    %v42 = vld [vmem:[#allocation2 + $0x98] sm:$0xff]
    %v43 = vld [vmem:[#allocation2 + $0xa0] sm:$0xff]
    %v44 = vld [vmem:[#allocation2 + $0xa8] sm:$0xff]
    %v45 = vld [vmem:[#allocation2 + $0xb0] sm:$0xff]
    %v46 = vld [vmem:[#allocation2 + $0xb8] sm:$0xff]
    %v47 = vld [vmem:[#allocation2 + $0xc0] sm:$0xff]
    %v48 = vld [vmem:[#allocation2 + $0xc8] sm:$0xff]
    %v49 = vld [vmem:[#allocation2 + $0xd0] sm:$0xff]
    %v50 = vld [vmem:[#allocation2 + $0xd8] sm:$0xff]
    %v51 = vld [vmem:[#allocation2 + $0xe0] sm:$0xff]
    %v52 = vld [vmem:[#allocation2 + $0xe8] sm:$0xff]
    %v53 = vld [vmem:[#allocation2 + $0xf0] sm:$0xff]
    %v54 = vld [vmem:[#allocation2 + $0xf8] sm:$0xff]
    %v55 = vld [vmem:[#allocation2 + $0x100] sm:$0xff]
    %v56 = vld [vmem:[#allocation2 + $0x108] sm:$0xff]
    %v57 = vld [vmem:[#allocation2 + $0x110] sm:$0xff]
    %v58 = vld [vmem:[#allocation2 + $0x118] sm:$0xff]
    %v59 = vld [vmem:[#allocation2 + $0x120] sm:$0xff]
    %v60 = vld [vmem:[#allocation2 + $0x128] sm:$0xff]
    %v61 = vld [vmem:[#allocation2 + $0x130] sm:$0xff]
    %v62 = vld [vmem:[#allocation2 + $0x138] sm:$0xff]
    %v63 = vld [vmem:[#allocation2 + $0x140] sm:$0xff]
    %v64 = vld [vmem:[#allocation2 + $0x148] sm:$0xff]
    %v65 = vld [vmem:[#allocation2 + $0x150] sm:$0xff]
    %v66 = vld [vmem:[#allocation2 + $0x158] sm:$0xff]
    %v67 = vld [vmem:[#allocation2 + $0x160] sm:$0xff]
    %v68 = vld [vmem:[#allocation2 + $0x168] sm:$0xff]
    %v69 = vld [vmem:[#allocation2 + $0x170] sm:$0xff]
    %v70 = vld [vmem:[#allocation2 + $0x178] sm:$0xff]
    %v71 = vld [vmem:[#allocation2 + $0x180] sm:$0xff]
    %v72 = vld [vmem:[#allocation2 + $0x188] sm:$0xff]
    %v73 = vld [vmem:[#allocation2 + $0x190] sm:$0xff]
    %v74 = vld [vmem:[#allocation2 + $0x198] sm:$0xff]
    %v75 = vld [vmem:[#allocation2 + $0x1a0] sm:$0xff]
    %v76 = vld [vmem:[#allocation2 + $0x1a8] sm:$0xff]
    %v77 = vld [vmem:[#allocation2 + $0x1b0] sm:$0xff]
    %v78 = vld [vmem:[#allocation2 + $0x1b8] sm:$0xff]
    %v79 = vld [vmem:[#allocation2 + $0x1c0] sm:$0xff]
    %v80 = vld [vmem:[#allocation2 + $0x1c8] sm:$0xff]
    %v81 = vld [vmem:[#allocation2 + $0x1d0] sm:$0xff]
    %v82 = vld [vmem:[#allocation2 + $0x1d8] sm:$0xff]
    %v83 = vld [vmem:[#allocation2 + $0x1e0] sm:$0xff]
    %v84 = vld [vmem:[#allocation2 + $0x1e8] sm:$0xff]
    %v85 = vld [vmem:[#allocation2 + $0x1f0] sm:$0xff]
    %v86 = vld [vmem:[#allocation2 + $0x1f8] sm:$0xff]
    %v87 = vmul.f32 %v23, %v23
    %v88 = vmul.f32 %v24, %v24
    %v89 = vmul.f32 %v25, %v25
    %v90 = vmul.f32 %v26, %v26
    %v91 = vmul.f32 %v27, %v27
    %v92 = vmul.f32 %v28, %v28
    %v93 = vmul.f32 %v29, %v29
    %v94 = vmul.f32 %v30, %v30
    %v95 = vmul.f32 %v31, %v31
    %v96 = vmul.f32 %v32, %v32
    %v97 = vmul.f32 %v33, %v33
    %v98 = vmul.f32 %v34, %v34
    %v99 = vmul.f32 %v35, %v35
    %v100 = vmul.f32 %v36, %v36
    %v101 = vmul.f32 %v37, %v37
    %v102 = vmul.f32 %v38, %v38
    %v103 = vmul.f32 %v39, %v39
    %v104 = vmul.f32 %v40, %v40
    %v105 = vmul.f32 %v41, %v41
    %v106 = vmul.f32 %v42, %v42
    %v107 = vmul.f32 %v43, %v43
    %v108 = vmul.f32 %v44, %v44
    %v109 = vmul.f32 %v45, %v45
    %v110 = vmul.f32 %v46, %v46
    %v111 = vmul.f32 %v47, %v47
    %v112 = vmul.f32 %v48, %v48
    %v113 = vmul.f32 %v49, %v49
    %v114 = vmul.f32 %v50, %v50
    %v115 = vmul.f32 %v51, %v51
    %v116 = vmul.f32 %v52, %v52
    %v117 = vmul.f32 %v53, %v53
    %v118 = vmul.f32 %v54, %v54
    %v119 = vmul.f32 %v55, %v55
    %v120 = vmul.f32 %v56, %v56
    %v121 = vmul.f32 %v57, %v57
    %v122 = vmul.f32 %v58, %v58
    %v123 = vmul.f32 %v59, %v59
    %v124 = vmul.f32 %v60, %v60
    %v125 = vmul.f32 %v61, %v61
    %v126 = vmul.f32 %v62, %v62
    %v127 = vmul.f32 %v63, %v63
    %v128 = vmul.f32 %v64, %v64
    %v129 = vmul.f32 %v65, %v65
    %v130 = vmul.f32 %v66, %v66
    %v131 = vmul.f32 %v67, %v67
    %v132 = vmul.f32 %v68, %v68
    %v133 = vmul.f32 %v69, %v69
    %v134 = vmul.f32 %v70, %v70
    %v135 = vmul.f32 %v71, %v71
    %v136 = vmul.f32 %v72, %v72
    %v137 = vmul.f32 %v73, %v73
    %v138 = vmul.f32 %v74, %v74
    %v139 = vmul.f32 %v75, %v75
    %v140 = vmul.f32 %v76, %v76
    %v141 = vmul.f32 %v77, %v77
    %v142 = vmul.f32 %v78, %v78
    %v143 = vmul.f32 %v79, %v79
    %v144 = vmul.f32 %v80, %v80
    %v145 = vmul.f32 %v81, %v81
    %v146 = vmul.f32 %v82, %v82
    %v147 = vmul.f32 %v83, %v83
    %v148 = vmul.f32 %v84, %v84
    %v149 = vmul.f32 %v85, %v85
    %v150 = vmul.f32 %v86, %v86
    %151 = vadd.xlane.f32.xlu0 %v87
    %v152 = vpop.xlane.xlu0 %151
    %153 = vadd.xlane.f32.xlu0 %v88
    %v154 = vpop.xlane.xlu0 %153
    %155 = vadd.xlane.f32.xlu0 %v89
    %v156 = vpop.xlane.xlu0 %155
    %157 = vadd.xlane.f32.xlu0 %v90
    %v158 = vpop.xlane.xlu0 %157
    %159 = vadd.xlane.f32.xlu0 %v91
    %v160 = vpop.xlane.xlu0 %159
    %161 = vadd.xlane.f32.xlu0 %v92
    %v162 = vpop.xlane.xlu0 %161
    %163 = vadd.xlane.f32.xlu0 %v93
    %v164 = vpop.xlane.xlu0 %163
    %165 = vadd.xlane.f32.xlu0 %v94
    %v166 = vpop.xlane.xlu0 %165
    %167 = vadd.xlane.f32.xlu0 %v95
    %v168 = vpop.xlane.xlu0 %167
    %169 = vadd.xlane.f32.xlu0 %v96
    %v170 = vpop.xlane.xlu0 %169
    %171 = vadd.xlane.f32.xlu0 %v97
    %v172 = vpop.xlane.xlu0 %171
    %173 = vadd.xlane.f32.xlu0 %v98
    %v174 = vpop.xlane.xlu0 %173
    %175 = vadd.xlane.f32.xlu0 %v99
    %v176 = vpop.xlane.xlu0 %175
    %177 = vadd.xlane.f32.xlu0 %v100
    %v178 = vpop.xlane.xlu0 %177
    %179 = vadd.xlane.f32.xlu0 %v101
    %v180 = vpop.xlane.xlu0 %179
    %181 = vadd.xlane.f32.xlu0 %v102
    %v182 = vpop.xlane.xlu0 %181
    %183 = vadd.xlane.f32.xlu0 %v103
    %v184 = vpop.xlane.xlu0 %183
    %185 = vadd.xlane.f32.xlu0 %v104
    %v186 = vpop.xlane.xlu0 %185
    %187 = vadd.xlane.f32.xlu0 %v105
    %v188 = vpop.xlane.xlu0 %187
    %189 = vadd.xlane.f32.xlu0 %v106
    %v190 = vpop.xlane.xlu0 %189
    %191 = vadd.xlane.f32.xlu0 %v107
    %v192 = vpop.xlane.xlu0 %191
    %193 = vadd.xlane.f32.xlu0 %v108
    %v194 = vpop.xlane.xlu0 %193
    %195 = vadd.xlane.f32.xlu0 %v109
    %v196 = vpop.xlane.xlu0 %195
    %197 = vadd.xlane.f32.xlu0 %v110
    %v198 = vpop.xlane.xlu0 %197
    %199 = vadd.xlane.f32.xlu0 %v111
    %v200 = vpop.xlane.xlu0 %199
    %201 = vadd.xlane.f32.xlu0 %v112
    %v202 = vpop.xlane.xlu0 %201
    %203 = vadd.xlane.f32.xlu0 %v113
    %v204 = vpop.xlane.xlu0 %203
    %205 = vadd.xlane.f32.xlu0 %v114
    %v206 = vpop.xlane.xlu0 %205
    %207 = vadd.xlane.f32.xlu0 %v115
    %v208 = vpop.xlane.xlu0 %207
    %209 = vadd.xlane.f32.xlu0 %v116
    %v210 = vpop.xlane.xlu0 %209
    %211 = vadd.xlane.f32.xlu0 %v117
    %v212 = vpop.xlane.xlu0 %211
    %213 = vadd.xlane.f32.xlu0 %v118
    %v214 = vpop.xlane.xlu0 %213
    %215 = vadd.xlane.f32.xlu0 %v119
    %v216 = vpop.xlane.xlu0 %215
    %217 = vadd.xlane.f32.xlu0 %v120
    %v218 = vpop.xlane.xlu0 %217
    %219 = vadd.xlane.f32.xlu0 %v121
    %v220 = vpop.xlane.xlu0 %219
    %221 = vadd.xlane.f32.xlu0 %v122
    %v222 = vpop.xlane.xlu0 %221
    %223 = vadd.xlane.f32.xlu0 %v123
    %v224 = vpop.xlane.xlu0 %223
    %225 = vadd.xlane.f32.xlu0 %v124
    %v226 = vpop.xlane.xlu0 %225
    %227 = vadd.xlane.f32.xlu0 %v125
    %v228 = vpop.xlane.xlu0 %227
    %229 = vadd.xlane.f32.xlu0 %v126
    %v230 = vpop.xlane.xlu0 %229
    %231 = vadd.xlane.f32.xlu0 %v127
    %v232 = vpop.xlane.xlu0 %231
    %233 = vadd.xlane.f32.xlu0 %v128
    %v234 = vpop.xlane.xlu0 %233
    %235 = vadd.xlane.f32.xlu0 %v129
    %v236 = vpop.xlane.xlu0 %235
    %237 = vadd.xlane.f32.xlu0 %v130
    %v238 = vpop.xlane.xlu0 %237
    %239 = vadd.xlane.f32.xlu0 %v131
    %v240 = vpop.xlane.xlu0 %239
    %241 = vadd.xlane.f32.xlu0 %v132
    %v242 = vpop.xlane.xlu0 %241
    %243 = vadd.xlane.f32.xlu0 %v133
    %v244 = vpop.xlane.xlu0 %243
    %245 = vadd.xlane.f32.xlu0 %v134
    %v246 = vpop.xlane.xlu0 %245
    %247 = vadd.xlane.f32.xlu0 %v135
    %v248 = vpop.xlane.xlu0 %247
    %249 = vadd.xlane.f32.xlu0 %v136
    %v250 = vpop.xlane.xlu0 %249
    %251 = vadd.xlane.f32.xlu0 %v137
    %v252 = vpop.xlane.xlu0 %251
    %253 = vadd.xlane.f32.xlu0 %v138
    %v254 = vpop.xlane.xlu0 %253
    %255 = vadd.xlane.f32.xlu0 %v139
    %v256 = vpop.xlane.xlu0 %255
    %257 = vadd.xlane.f32.xlu0 %v140
    %v258 = vpop.xlane.xlu0 %257
    %259 = vadd.xlane.f32.xlu0 %v141
    %v260 = vpop.xlane.xlu0 %259
    %261 = vadd.xlane.f32.xlu0 %v142
    %v262 = vpop.xlane.xlu0 %261
    %263 = vadd.xlane.f32.xlu0 %v143
    %v264 = vpop.xlane.xlu0 %263
    %265 = vadd.xlane.f32.xlu0 %v144
    %v266 = vpop.xlane.xlu0 %265
    %267 = vadd.xlane.f32.xlu0 %v145
    %v268 = vpop.xlane.xlu0 %267
    %269 = vadd.xlane.f32.xlu0 %v146
    %v270 = vpop.xlane.xlu0 %269
    %271 = vadd.xlane.f32.xlu0 %v147
    %v272 = vpop.xlane.xlu0 %271
    %273 = vadd.xlane.f32.xlu0 %v148
    %v274 = vpop.xlane.xlu0 %273
    %275 = vadd.xlane.f32.xlu0 %v149
    %v276 = vpop.xlane.xlu0 %275
    %277 = vadd.xlane.f32.xlu0 %v150
    %v278 = vpop.xlane.xlu0 %277
    %v279 = vmax.f32 %v152, 1e-24
    %v280 = vmax.f32 %v154, 1e-24
    %v281 = vmax.f32 %v156, 1e-24
    %v282 = vmax.f32 %v158, 1e-24
    %v283 = vmax.f32 %v160, 1e-24
    %v284 = vmax.f32 %v162, 1e-24
    %v285 = vmax.f32 %v164, 1e-24
    %v286 = vmax.f32 %v166, 1e-24
    %v287 = vmax.f32 %v168, 1e-24
    %v288 = vmax.f32 %v170, 1e-24
    %v289 = vmax.f32 %v172, 1e-24
    %v290 = vmax.f32 %v174, 1e-24
    %v291 = vmax.f32 %v176, 1e-24
    %v292 = vmax.f32 %v178, 1e-24
    %v293 = vmax.f32 %v180, 1e-24
    %v294 = vmax.f32 %v182, 1e-24
    %v295 = vmax.f32 %v184, 1e-24
    %v296 = vmax.f32 %v186, 1e-24
    %v297 = vmax.f32 %v188, 1e-24
    %v298 = vmax.f32 %v190, 1e-24
    %v299 = vmax.f32 %v192, 1e-24
    %v300 = vmax.f32 %v194, 1e-24
    %v301 = vmax.f32 %v196, 1e-24
    %v302 = vmax.f32 %v198, 1e-24
    %v303 = vmax.f32 %v200, 1e-24
    %v304 = vmax.f32 %v202, 1e-24
    %v305 = vmax.f32 %v204, 1e-24
    %v306 = vmax.f32 %v206, 1e-24
    %v307 = vmax.f32 %v208, 1e-24
    %v308 = vmax.f32 %v210, 1e-24
    %v309 = vmax.f32 %v212, 1e-24
    %v310 = vmax.f32 %v214, 1e-24
    %v311 = vmax.f32 %v216, 1e-24
    %v312 = vmax.f32 %v218, 1e-24
    %v313 = vmax.f32 %v220, 1e-24
    %v314 = vmax.f32 %v222, 1e-24
    %v315 = vmax.f32 %v224, 1e-24
    %v316 = vmax.f32 %v226, 1e-24
    %v317 = vmax.f32 %v228, 1e-24
    %v318 = vmax.f32 %v230, 1e-24
    %v319 = vmax.f32 %v232, 1e-24
    %v320 = vmax.f32 %v234, 1e-24
    %v321 = vmax.f32 %v236, 1e-24
    %v322 = vmax.f32 %v238, 1e-24
    %v323 = vmax.f32 %v240, 1e-24
    %v324 = vmax.f32 %v242, 1e-24
    %v325 = vmax.f32 %v244, 1e-24
    %v326 = vmax.f32 %v246, 1e-24
    %v327 = vmax.f32 %v248, 1e-24
    %v328 = vmax.f32 %v250, 1e-24
    %v329 = vmax.f32 %v252, 1e-24
    %v330 = vmax.f32 %v254, 1e-24
    %v331 = vmax.f32 %v256, 1e-24
    %v332 = vmax.f32 %v258, 1e-24
    %v333 = vmax.f32 %v260, 1e-24
    %v334 = vmax.f32 %v262, 1e-24
    %v335 = vmax.f32 %v264, 1e-24
    %v336 = vmax.f32 %v266, 1e-24
    %v337 = vmax.f32 %v268, 1e-24
    %v338 = vmax.f32 %v270, 1e-24
    %v339 = vmax.f32 %v272, 1e-24
    %v340 = vmax.f32 %v274, 1e-24
    %v341 = vmax.f32 %v276, 1e-24
    %v342 = vmax.f32 %v278, 1e-24
    %v343 = vrsqrt.pop %v279
    %v344 = vrsqrt.pop %v280
    %v345 = vrsqrt.pop %v281
    %v346 = vrsqrt.pop %v282
    %v347 = vrsqrt.pop %v283
    %v348 = vrsqrt.pop %v284
    %v349 = vrsqrt.pop %v285
    %v350 = vrsqrt.pop %v286
    %v351 = vrsqrt.pop %v287
    %v352 = vrsqrt.pop %v288
    %v353 = vrsqrt.pop %v289
    %v354 = vrsqrt.pop %v290
    %v355 = vrsqrt.pop %v291
    %v356 = vrsqrt.pop %v292
    %v357 = vrsqrt.pop %v293
    %v358 = vrsqrt.pop %v294
    %v359 = vrsqrt.pop %v295
    %v360 = vrsqrt.pop %v296
    %v361 = vrsqrt.pop %v297
    %v362 = vrsqrt.pop %v298
    %v363 = vrsqrt.pop %v299
    %v364 = vrsqrt.pop %v300
    %v365 = vrsqrt.pop %v301
    %v366 = vrsqrt.pop %v302
    %v367 = vrsqrt.pop %v303
    %v368 = vrsqrt.pop %v304
    %v369 = vrsqrt.pop %v305
    %v370 = vrsqrt.pop %v306
    %v371 = vrsqrt.pop %v307
    %v372 = vrsqrt.pop %v308
    %v373 = vrsqrt.pop %v309
    %v374 = vrsqrt.pop %v310
    %v375 = vrsqrt.pop %v311
    %v376 = vrsqrt.pop %v312
    %v377 = vrsqrt.pop %v313
    %v378 = vrsqrt.pop %v314
    %v379 = vrsqrt.pop %v315
    %v380 = vrsqrt.pop %v316
    %v381 = vrsqrt.pop %v317
    %v382 = vrsqrt.pop %v318
    %v383 = vrsqrt.pop %v319
    %v384 = vrsqrt.pop %v320
    %v385 = vrsqrt.pop %v321
    %v386 = vrsqrt.pop %v322
    %v387 = vrsqrt.pop %v323
    %v388 = vrsqrt.pop %v324
    %v389 = vrsqrt.pop %v325
    %v390 = vrsqrt.pop %v326
    %v391 = vrsqrt.pop %v327
    %v392 = vrsqrt.pop %v328
    %v393 = vrsqrt.pop %v329
    %v394 = vrsqrt.pop %v330
    %v395 = vrsqrt.pop %v331
    %v396 = vrsqrt.pop %v332
    %v397 = vrsqrt.pop %v333
    %v398 = vrsqrt.pop %v334
    %v399 = vrsqrt.pop %v335
    %v400 = vrsqrt.pop %v336
    %v401 = vrsqrt.pop %v337
    %v402 = vrsqrt.pop %v338
    %v403 = vrsqrt.pop %v339
    %v404 = vrsqrt.pop %v340
    %v405 = vrsqrt.pop %v341
    %v406 = vrsqrt.pop %v342
    %v407 = vmul.f32 %v23, %v343
    %v408 = vmul.f32 %v24, %v344
    %v409 = vmul.f32 %v25, %v345
    %v410 = vmul.f32 %v26, %v346
    %v411 = vmul.f32 %v27, %v347
    %v412 = vmul.f32 %v28, %v348
    %v413 = vmul.f32 %v29, %v349
    %v414 = vmul.f32 %v30, %v350
    %v415 = vmul.f32 %v31, %v351
    %v416 = vmul.f32 %v32, %v352
    %v417 = vmul.f32 %v33, %v353
    %v418 = vmul.f32 %v34, %v354
    %v419 = vmul.f32 %v35, %v355
    %v420 = vmul.f32 %v36, %v356
    %v421 = vmul.f32 %v37, %v357
    %v422 = vmul.f32 %v38, %v358
    %v423 = vmul.f32 %v39, %v359
    %v424 = vmul.f32 %v40, %v360
    %v425 = vmul.f32 %v41, %v361
    %v426 = vmul.f32 %v42, %v362
    %v427 = vmul.f32 %v43, %v363
    %v428 = vmul.f32 %v44, %v364
    %v429 = vmul.f32 %v45, %v365
    %v430 = vmul.f32 %v46, %v366
    %v431 = vmul.f32 %v47, %v367
    %v432 = vmul.f32 %v48, %v368
    %v433 = vmul.f32 %v49, %v369
    %v434 = vmul.f32 %v50, %v370
    %v435 = vmul.f32 %v51, %v371
    %v436 = vmul.f32 %v52, %v372
    %v437 = vmul.f32 %v53, %v373
    %v438 = vmul.f32 %v54, %v374
    %v439 = vmul.f32 %v55, %v375
    %v440 = vmul.f32 %v56, %v376
    %v441 = vmul.f32 %v57, %v377
    %v442 = vmul.f32 %v58, %v378
    %v443 = vmul.f32 %v59, %v379
    %v444 = vmul.f32 %v60, %v380
    %v445 = vmul.f32 %v61, %v381
    %v446 = vmul.f32 %v62, %v382
    %v447 = vmul.f32 %v63, %v383
    %v448 = vmul.f32 %v64, %v384
    %v449 = vmul.f32 %v65, %v385
    %v450 = vmul.f32 %v66, %v386
    %v451 = vmul.f32 %v67, %v387
    %v452 = vmul.f32 %v68, %v388
    %v453 = vmul.f32 %v69, %v389
    %v454 = vmul.f32 %v70, %v390
    %v455 = vmul.f32 %v71, %v391
    %v456 = vmul.f32 %v72, %v392
    %v457 = vmul.f32 %v73, %v393
    %v458 = vmul.f32 %v74, %v394
    %v459 = vmul.f32 %v75, %v395
    %v460 = vmul.f32 %v76, %v396
    %v461 = vmul.f32 %v77, %v397
    %v462 = vmul.f32 %v78, %v398
    %v463 = vmul.f32 %v79, %v399
    %v464 = vmul.f32 %v80, %v400
    %v465 = vmul.f32 %v81, %v401
    %v466 = vmul.f32 %v82, %v402
    %v467 = vmul.f32 %v83, %v403
    %v468 = vmul.f32 %v84, %v404
    %v469 = vmul.f32 %v85, %v405
    %v470 = vmul.f32 %v86, %v406
    %471 = vxpose.xlu0.b32.start [1/16] %v407, 128
    %472 = vxpose.xlu0.b32.cont [2/16] %v408, 128
    %473 = vxpose.xlu0.b32.cont [3/16] %v409, 128
    %474 = vxpose.xlu0.b32.cont [4/16] %v410, 128
    %475 = vxpose.xlu0.b32.cont [5/16] %v411, 128
    %476 = vxpose.xlu0.b32.cont [6/16] %v412, 128
    %477 = vxpose.xlu0.b32.cont [7/16] %v413, 128
    %478 = vxpose.xlu0.b32.cont [8/16] %v414, 128
    %479 = vxpose.xlu0.b32.cont [9/16] %v415, 128
    %480 = vxpose.xlu0.b32.cont [10/16] %v416, 128
    %481 = vxpose.xlu0.b32.cont [11/16] %v417, 128
    %482 = vxpose.xlu0.b32.cont [12/16] %v418, 128
    %483 = vxpose.xlu0.b32.cont [13/16] %v419, 128
    %484 = vxpose.xlu0.b32.cont [14/16] %v420, 128
    %485 = vxpose.xlu0.b32.cont [15/16] %v421, 128
    %486 = vxpose.xlu0.b32.end [16/16] %v422, 128
    %v487 = vpop.trf.xlu0
    %v488 = vpop.trf.xlu0
    %v489 = vpop.trf.xlu0
    %v490 = vpop.trf.xlu0
    %v491 = vpop.trf.xlu0
    %v492 = vpop.trf.xlu0
    %v493 = vpop.trf.xlu0
    %v494 = vpop.trf.xlu0
    %v495 = vpop.trf.xlu0
    %v496 = vpop.trf.xlu0
    %v497 = vpop.trf.xlu0
    %v498 = vpop.trf.xlu0
    %v499 = vpop.trf.xlu0
    %v500 = vpop.trf.xlu0
    %v501 = vpop.trf.xlu0
    %v502 = vpop.trf.xlu0
    %503 = vxpose.xlu0.b32.start [1/16] %v423, 128
    %504 = vxpose.xlu0.b32.cont [2/16] %v424, 128
    %505 = vxpose.xlu0.b32.cont [3/16] %v425, 128
    %506 = vxpose.xlu0.b32.cont [4/16] %v426, 128
    %507 = vxpose.xlu0.b32.cont [5/16] %v427, 128
    %508 = vxpose.xlu0.b32.cont [6/16] %v428, 128
    %509 = vxpose.xlu0.b32.cont [7/16] %v429, 128
    %510 = vxpose.xlu0.b32.cont [8/16] %v430, 128
    %511 = vxpose.xlu0.b32.cont [9/16] %v431, 128
    %512 = vxpose.xlu0.b32.cont [10/16] %v432, 128
    %513 = vxpose.xlu0.b32.cont [11/16] %v433, 128
    %514 = vxpose.xlu0.b32.cont [12/16] %v434, 128
    %515 = vxpose.xlu0.b32.cont [13/16] %v435, 128
    %516 = vxpose.xlu0.b32.cont [14/16] %v436, 128
    %517 = vxpose.xlu0.b32.cont [15/16] %v437, 128
    %518 = vxpose.xlu0.b32.end [16/16] %v438, 128
    %v519 = vpop.trf.xlu0
    %v520 = vpop.trf.xlu0
    %v521 = vpop.trf.xlu0
    %v522 = vpop.trf.xlu0
    %v523 = vpop.trf.xlu0
    %v524 = vpop.trf.xlu0
    %v525 = vpop.trf.xlu0
    %v526 = vpop.trf.xlu0
    %v527 = vpop.trf.xlu0
    %v528 = vpop.trf.xlu0
    %v529 = vpop.trf.xlu0
    %v530 = vpop.trf.xlu0
    %v531 = vpop.trf.xlu0
    %v532 = vpop.trf.xlu0
    %v533 = vpop.trf.xlu0
    %v534 = vpop.trf.xlu0
    %535 = vxpose.xlu0.b32.start [1/16] %v439, 128
    %536 = vxpose.xlu0.b32.cont [2/16] %v440, 128
    %537 = vxpose.xlu0.b32.cont [3/16] %v441, 128
    %538 = vxpose.xlu0.b32.cont [4/16] %v442, 128
    %539 = vxpose.xlu0.b32.cont [5/16] %v443, 128
    %540 = vxpose.xlu0.b32.cont [6/16] %v444, 128
    %541 = vxpose.xlu0.b32.cont [7/16] %v445, 128
    %542 = vxpose.xlu0.b32.cont [8/16] %v446, 128
    %543 = vxpose.xlu0.b32.cont [9/16] %v447, 128
    %544 = vxpose.xlu0.b32.cont [10/16] %v448, 128
    %545 = vxpose.xlu0.b32.cont [11/16] %v449, 128
    %546 = vxpose.xlu0.b32.cont [12/16] %v450, 128
    %547 = vxpose.xlu0.b32.cont [13/16] %v451, 128
    %548 = vxpose.xlu0.b32.cont [14/16] %v452, 128
    %549 = vxpose.xlu0.b32.cont [15/16] %v453, 128
    %550 = vxpose.xlu0.b32.end [16/16] %v454, 128
    %v551 = vpop.trf.xlu0
    %v552 = vpop.trf.xlu0
    %v553 = vpop.trf.xlu0
    %v554 = vpop.trf.xlu0
    %v555 = vpop.trf.xlu0
    %v556 = vpop.trf.xlu0
    %v557 = vpop.trf.xlu0
    %v558 = vpop.trf.xlu0
    %v559 = vpop.trf.xlu0
    %v560 = vpop.trf.xlu0
    %v561 = vpop.trf.xlu0
    %v562 = vpop.trf.xlu0
    %v563 = vpop.trf.xlu0
    %v564 = vpop.trf.xlu0
    %v565 = vpop.trf.xlu0
    %v566 = vpop.trf.xlu0
    %567 = vxpose.xlu0.b32.start [1/16] %v455, 128
    %568 = vxpose.xlu0.b32.cont [2/16] %v456, 128
    %569 = vxpose.xlu0.b32.cont [3/16] %v457, 128
    %570 = vxpose.xlu0.b32.cont [4/16] %v458, 128
    %571 = vxpose.xlu0.b32.cont [5/16] %v459, 128
    %572 = vxpose.xlu0.b32.cont [6/16] %v460, 128
    %573 = vxpose.xlu0.b32.cont [7/16] %v461, 128
    %574 = vxpose.xlu0.b32.cont [8/16] %v462, 128
    %575 = vxpose.xlu0.b32.cont [9/16] %v463, 128
    %576 = vxpose.xlu0.b32.cont [10/16] %v464, 128
    %577 = vxpose.xlu0.b32.cont [11/16] %v465, 128
    %578 = vxpose.xlu0.b32.cont [12/16] %v466, 128
    %579 = vxpose.xlu0.b32.cont [13/16] %v467, 128
    %580 = vxpose.xlu0.b32.cont [14/16] %v468, 128
    %581 = vxpose.xlu0.b32.cont [15/16] %v469, 128
    %582 = vxpose.xlu0.b32.end [16/16] %v470, 128
    %v583 = vpop.trf.xlu0
    %v584 = vpop.trf.xlu0
    %v585 = vpop.trf.xlu0
    %v586 = vpop.trf.xlu0
    %v587 = vpop.trf.xlu0
    %v588 = vpop.trf.xlu0
    %v589 = vpop.trf.xlu0
    %v590 = vpop.trf.xlu0
    %v591 = vpop.trf.xlu0
    %v592 = vpop.trf.xlu0
    %v593 = vpop.trf.xlu0
    %v594 = vpop.trf.xlu0
    %v595 = vpop.trf.xlu0
    %v596 = vpop.trf.xlu0
    %v597 = vpop.trf.xlu0
    %v598 = vpop.trf.xlu0
    %v599 = vpack.c.bf16 %v488, %v487
    %v600 = vpack.c.bf16 %v520, %v519
    %v601 = vpack.c.bf16 %v552, %v551
    %v602 = vpack.c.bf16 %v584, %v583
    %v603 = vpack.c.bf16 %v490, %v489
    %v604 = vpack.c.bf16 %v522, %v521
    %v605 = vpack.c.bf16 %v554, %v553
    %v606 = vpack.c.bf16 %v586, %v585
    %v607 = vpack.c.bf16 %v492, %v491
    %v608 = vpack.c.bf16 %v524, %v523
    %v609 = vpack.c.bf16 %v556, %v555
    %v610 = vpack.c.bf16 %v588, %v587
    %v611 = vpack.c.bf16 %v494, %v493
    %v612 = vpack.c.bf16 %v526, %v525
    %v613 = vpack.c.bf16 %v558, %v557
    %v614 = vpack.c.bf16 %v590, %v589
    %v615 = vpack.c.bf16 %v496, %v495
    %v616 = vpack.c.bf16 %v528, %v527
    %v617 = vpack.c.bf16 %v560, %v559
    %v618 = vpack.c.bf16 %v592, %v591
    %v619 = vpack.c.bf16 %v498, %v497
    %v620 = vpack.c.bf16 %v530, %v529
    %v621 = vpack.c.bf16 %v562, %v561
    %v622 = vpack.c.bf16 %v594, %v593
    %v623 = vpack.c.bf16 %v500, %v499
    %v624 = vpack.c.bf16 %v532, %v531
    %v625 = vpack.c.bf16 %v564, %v563
    %v626 = vpack.c.bf16 %v596, %v595
    %v627 = vpack.c.bf16 %v502, %v501
    %v628 = vpack.c.bf16 %v534, %v533
    %v629 = vpack.c.bf16 %v566, %v565
    %v630 = vpack.c.bf16 %v598, %v597
    %v663 = vunpack.c.l.b16 %v599
    %v664 = vunpack.c.l.b16 %v600
    %v665 = vunpack.c.l.b16 %v601
    %v666 = vunpack.c.l.b16 %v602
    %v667 = vunpack.c.h.b16 %v599
    %v668 = vunpack.c.h.b16 %v600
    %v669 = vunpack.c.h.b16 %v601
    %v670 = vunpack.c.h.b16 %v602
    %v671 = vunpack.c.l.b16 %v603
    %v672 = vunpack.c.l.b16 %v604
    %v673 = vunpack.c.l.b16 %v605
    %v674 = vunpack.c.l.b16 %v606
    %v675 = vunpack.c.h.b16 %v603
    %v676 = vunpack.c.h.b16 %v604
    %v677 = vunpack.c.h.b16 %v605
    %v678 = vunpack.c.h.b16 %v606
    %v679 = vunpack.c.l.b16 %v607
    %v680 = vunpack.c.l.b16 %v608
    %v681 = vunpack.c.l.b16 %v609
    %v682 = vunpack.c.l.b16 %v610
    %v683 = vunpack.c.h.b16 %v607
    %v684 = vunpack.c.h.b16 %v608
    %v685 = vunpack.c.h.b16 %v609
    %v686 = vunpack.c.h.b16 %v610
    %v687 = vunpack.c.l.b16 %v611
    %v688 = vunpack.c.l.b16 %v612
    %v689 = vunpack.c.l.b16 %v613
    %v690 = vunpack.c.l.b16 %v614
    %v691 = vunpack.c.h.b16 %v611
    %v692 = vunpack.c.h.b16 %v612
    %v693 = vunpack.c.h.b16 %v613
    %v694 = vunpack.c.h.b16 %v614
    %v695 = vunpack.c.l.b16 %v615
    %v696 = vunpack.c.l.b16 %v616
    %v697 = vunpack.c.l.b16 %v617
    %v698 = vunpack.c.l.b16 %v618
    %v699 = vunpack.c.h.b16 %v615
    %v700 = vunpack.c.h.b16 %v616
    %v701 = vunpack.c.h.b16 %v617
    %v702 = vunpack.c.h.b16 %v618
    %v703 = vunpack.c.l.b16 %v619
    %v704 = vunpack.c.l.b16 %v620
    %v705 = vunpack.c.l.b16 %v621
    %v706 = vunpack.c.l.b16 %v622
    %v707 = vunpack.c.h.b16 %v619
    %v708 = vunpack.c.h.b16 %v620
    %v709 = vunpack.c.h.b16 %v621
    %v710 = vunpack.c.h.b16 %v622
    %v711 = vunpack.c.l.b16 %v623
    %v712 = vunpack.c.l.b16 %v624
    %v713 = vunpack.c.l.b16 %v625
    %v714 = vunpack.c.l.b16 %v626
    %v715 = vunpack.c.h.b16 %v623
    %v716 = vunpack.c.h.b16 %v624
    %v717 = vunpack.c.h.b16 %v625
    %v718 = vunpack.c.h.b16 %v626
    %v719 = vunpack.c.l.b16 %v627
    %v720 = vunpack.c.l.b16 %v628
    %v721 = vunpack.c.l.b16 %v629
    %v722 = vunpack.c.l.b16 %v630
    %v723 = vunpack.c.h.b16 %v627
    %v724 = vunpack.c.h.b16 %v628
    %v725 = vunpack.c.h.b16 %v629
    %v726 = vunpack.c.h.b16 %v630
    %v727 = vpack.c.b16 %v664, %v663
    %v728 = vpack.c.b16 %v666, %v665
    %v729 = vpack.c.b16 %v668, %v667
    %v730 = vpack.c.b16 %v670, %v669
    %v731 = vpack.c.b16 %v672, %v671
    %v732 = vpack.c.b16 %v674, %v673
    %v733 = vpack.c.b16 %v676, %v675
    %v734 = vpack.c.b16 %v678, %v677
    %v735 = vpack.c.b16 %v680, %v679
    %v736 = vpack.c.b16 %v682, %v681
    %v737 = vpack.c.b16 %v684, %v683
    %v738 = vpack.c.b16 %v686, %v685
    %v739 = vpack.c.b16 %v688, %v687
    %v740 = vpack.c.b16 %v690, %v689
    %v741 = vpack.c.b16 %v692, %v691
    %v742 = vpack.c.b16 %v694, %v693
    %v743 = vpack.c.b16 %v696, %v695
    %v744 = vpack.c.b16 %v698, %v697
    %v745 = vpack.c.b16 %v700, %v699
    %v746 = vpack.c.b16 %v702, %v701
    %v747 = vpack.c.b16 %v704, %v703
    %v748 = vpack.c.b16 %v706, %v705
    %v749 = vpack.c.b16 %v708, %v707
    %v750 = vpack.c.b16 %v710, %v709
    %v751 = vpack.c.b16 %v712, %v711
    %v752 = vpack.c.b16 %v714, %v713
    %v753 = vpack.c.b16 %v716, %v715
    %v754 = vpack.c.b16 %v718, %v717
    %v755 = vpack.c.b16 %v720, %v719
    %v756 = vpack.c.b16 %v722, %v721
    %v757 = vpack.c.b16 %v724, %v723
    %v758 = vpack.c.b16 %v726, %v725
    %791 = vst [vmem:[#allocation5] sm:$0xff] %v727
    %792 = vst [vmem:[#allocation5 + $0x8] sm:$0xff] %v728
    %793 = vst [vmem:[#allocation5 + $0x10] sm:$0xff] %v729
    %794 = vst [vmem:[#allocation5 + $0x18] sm:$0xff] %v730
    %795 = vst [vmem:[#allocation5 + $0x20] sm:$0xff] %v731
    %796 = vst [vmem:[#allocation5 + $0x28] sm:$0xff] %v732
    %797 = vst [vmem:[#allocation5 + $0x30] sm:$0xff] %v733
    %798 = vst [vmem:[#allocation5 + $0x38] sm:$0xff] %v734
    %799 = vst [vmem:[#allocation5 + $0x40] sm:$0xff] %v735
    %800 = vst [vmem:[#allocation5 + $0x48] sm:$0xff] %v736
    %801 = vst [vmem:[#allocation5 + $0x50] sm:$0xff] %v737
    %802 = vst [vmem:[#allocation5 + $0x58] sm:$0xff] %v738
    %803 = vst [vmem:[#allocation5 + $0x60] sm:$0xff] %v739
    %804 = vst [vmem:[#allocation5 + $0x68] sm:$0xff] %v740
    %805 = vst [vmem:[#allocation5 + $0x70] sm:$0xff] %v741
    %806 = vst [vmem:[#allocation5 + $0x78] sm:$0xff] %v742
    %807 = vst [vmem:[#allocation5 + $0x80] sm:$0xff] %v743
    %808 = vst [vmem:[#allocation5 + $0x88] sm:$0xff] %v744
    %809 = vst [vmem:[#allocation5 + $0x90] sm:$0xff] %v745
    %810 = vst [vmem:[#allocation5 + $0x98] sm:$0xff] %v746
    %811 = vst [vmem:[#allocation5 + $0xa0] sm:$0xff] %v747
    %812 = vst [vmem:[#allocation5 + $0xa8] sm:$0xff] %v748
    %813 = vst [vmem:[#allocation5 + $0xb0] sm:$0xff] %v749
    %814 = vst [vmem:[#allocation5 + $0xb8] sm:$0xff] %v750
    %815 = vst [vmem:[#allocation5 + $0xc0] sm:$0xff] %v751
    %816 = vst [vmem:[#allocation5 + $0xc8] sm:$0xff] %v752
    %817 = vst [vmem:[#allocation5 + $0xd0] sm:$0xff] %v753
    %818 = vst [vmem:[#allocation5 + $0xd8] sm:$0xff] %v754
    %819 = vst [vmem:[#allocation5 + $0xe0] sm:$0xff] %v755
    %820 = vst [vmem:[#allocation5 + $0xe8] sm:$0xff] %v756
    %821 = vst [vmem:[#allocation5 + $0xf0] sm:$0xff] %v757
    %822 = vst [vmem:[#allocation5 + $0xf8] sm:$0xff] %v758
    // Predicated region
    $region10: #{tpu_custom_call.1} parent=1 // pred_check
      _
    $region11: #{tpu_custom_call.1} parent=1 // pred_check_branch
      %824 = sbr.rel (0) target = $region13
    $region12: #{tpu_custom_call.1} parent=1 // pred_region
      %s826 = ssub.s32 4096, 4096
      %827 = vsyncadd [#allocation4], %s826
      %s828 = sshll.u32 [#allocation5], 4
      %s829 = int_to_ptr.vmem [resolvable:$true] %s828
      %834 = dma.vmem_to_hbm [thread:$0]  %s829, 4096, %s1, [#allocation4], 256, 256, 16
    $region13: #{tpu_custom_call.1} parent=1 // pred_fallthru
      _
    // Predicated region
    $region14: #{tpu_custom_call.1} parent=1 // pred_check
      _
    $region15: #{tpu_custom_call.1} parent=1 // pred_check_branch
      %836 = sbr.rel (0) target = $region17
    $region16: #{tpu_custom_call.1} parent=1 // pred_region
      %837 = dma.done [#allocation4], 4096
    $region17: #{tpu_custom_call.1} parent=1 // pred_fallthru
      _
    %838 = vsyncpa [#allocation3], 1
    %839 = vsyncpa [#allocation4], 1

</llo_original>
